<compile_context>
chip_gen: v7x
topology: tpu7x:2x2x1
jax: 0.10.0
libtpu: 0.0.40
codegen_flags: <defaults>
</compile_context>

<pallas_src>
import math

import jax
import jax.numpy as jnp
from jax.experimental import pallas as pl
from jax.experimental.pallas import tpu as pltpu

_LANE = 128     # last dim of every tile padded to a multiple of this
_SUBLANE = 8    # f32 sublane count; block_m kept a multiple of this


def _round_up(x, m):
    return (x + m - 1) // m * m


def _mlp_kernel(x_ref, w1_ref, b1_ref, w2_ref, b2_ref, o_ref):
    # Fused hot path: matmul -> bias -> LeakyReLU(0.01) -> matmul -> bias.
    # Matmul operands stay in the compute dtype (bf16 by default); the MXU
    # accumulates in f32 via preferred_element_type.
    h = jnp.dot(x_ref[...], w1_ref[...], preferred_element_type=jnp.float32)
    h = h + b1_ref[...]
    h = jnp.where(h > 0, h, jnp.float32(0.01) * h)          # LeakyReLU
    y = jnp.dot(h.astype(w2_ref.dtype), w2_ref[...],
                preferred_element_type=jnp.float32)
    y = y + b2_ref[...]
    o_ref[...] = y.astype(o_ref.dtype)


def mlp_forward(x, w1, b1, w2, b2, *, block_m=256, compute_dtype=jnp.bfloat16):
    """x: [B, in_dim]; w1: [in_dim, hidden]; b1: [1, hidden] (or [hidden]);
       w2: [hidden, in_dim]; b2: [1, in_dim] (or [in_dim]) -> [B, in_dim] (x.dtype)."""
    B, in_dim = x.shape
    hidden = w1.shape[1]
    b1 = b1.reshape(1, -1)
    b2 = b2.reshape(1, -1)
    acc_dtype = jnp.float32

    # Lane-dense padding of the feature axes (exact: pad regions are all zero).
    in_pad = _round_up(in_dim, _LANE)
    hid_pad = _round_up(hidden, _LANE)

    # Batch tiling: big tiles to amortize per-grid-step overhead, but never a
    # whole tile of pure padding rows.
    bm = _round_up(min(block_m, _round_up(B, _SUBLANE)), _SUBLANE)
    B_pad = _round_up(B, bm)

    x_p = jnp.zeros((B_pad, in_pad), compute_dtype).at[:B, :in_dim].set(
        x.astype(compute_dtype))
    w1_p = jnp.zeros((in_pad, hid_pad), compute_dtype).at[:in_dim, :hidden].set(
        w1.astype(compute_dtype))
    b1_p = jnp.zeros((1, hid_pad), acc_dtype).at[:, :hidden].set(b1.astype(acc_dtype))
    w2_p = jnp.zeros((hid_pad, in_pad), compute_dtype).at[:hidden, :in_dim].set(
        w2.astype(compute_dtype))
    b2_p = jnp.zeros((1, in_pad), acc_dtype).at[:, :in_dim].set(b2.astype(acc_dtype))

    grid = (B_pad // bm,)
    out = pl.pallas_call(
        _mlp_kernel,
        out_shape=jax.ShapeDtypeStruct((B_pad, in_pad), x.dtype),
        grid_spec=pltpu.PrefetchScalarGridSpec(
            num_scalar_prefetch=0,
            grid=grid,
            in_specs=[
                pl.BlockSpec((bm, in_pad), lambda i: (i, 0)),       # x tile (pipelined)
                pl.BlockSpec((in_pad, hid_pad), lambda i: (0, 0)),  # W1 (resident)
                pl.BlockSpec((1, hid_pad), lambda i: (0, 0)),       # b1 (resident)
                pl.BlockSpec((hid_pad, in_pad), lambda i: (0, 0)),  # W2 (resident)
                pl.BlockSpec((1, in_pad), lambda i: (0, 0)),        # b2 (resident)
            ],
            out_specs=pl.BlockSpec((bm, in_pad), lambda i: (i, 0)),
        ),
        compiler_params=pltpu.CompilerParams(
            # batch axis is embarrassingly parallel -> megacore sharding on v7x
            dimension_semantics=("parallel",),
        ),
    )(x_p, w1_p, b1_p, w2_p, b2_p)
    return out[:B, :in_dim]


def init_mlp_params(key, latent_dim, num_var, dtype=jnp.float32):
    """Deterministic init matching nn.Linear's U(-1/sqrt(fan_in), 1/sqrt(fan_in)).
    Weights are returned already transposed to [in, out] layout for the kernel."""
    in_dim = latent_dim // num_var
    hidden = latent_dim
    k1, k2, k3, k4 = jax.random.split(key, 4)

    bound1 = 1.0 / math.sqrt(in_dim)
    w1 = jax.random.uniform(k1, (in_dim, hidden), dtype, -bound1, bound1)
    b1 = jax.random.uniform(k2, (1, hidden), dtype, -bound1, bound1)

    bound2 = 1.0 / math.sqrt(hidden)
    w2 = jax.random.uniform(k3, (hidden, in_dim), dtype, -bound2, bound2)
    b2 = jax.random.uniform(k4, (1, in_dim), dtype, -bound2, bound2)
    return w1, b1, w2, b2


def mlp_reference(x, w1, b1, w2, b2):
    h = x @ w1 + b1
    h = jnp.where(h > 0, h, 0.01 * h)
    return h @ w2 + b2


if __name__ == "__main__":
    latent_dim = 32
    num_var = 4
    batch = 64
    in_dim = latent_dim // num_var

    key = jax.random.PRNGKey(0)
    kx, kp = jax.random.split(key)
    x = jax.random.normal(kx, (batch, in_dim), dtype=jnp.float32)
    w1, b1, w2, b2 = init_mlp_params(kp, latent_dim, num_var)

    ref = mlp_reference(x, w1, b1, w2, b2)

    # Exact f32 datapath (tight check of kernel semantics + padding correctness).
    out_f32 = jax.block_until_ready(
        mlp_forward(x, w1, b1, w2, b2, compute_dtype=jnp.float32))
    assert out_f32.shape == (batch, in_dim)
    assert jnp.allclose(out_f32, ref, atol=1e-5, rtol=1e-5), "f32 mismatch vs reference"

    # Default fast path: bf16 MXU operands, f32 accumulate (looser tolerance).
    out_bf16 = jax.block_until_ready(mlp_forward(x, w1, b1, w2, b2))
    assert out_bf16.shape == (batch, in_dim)
    assert jnp.allclose(out_bf16, ref, atol=5e-2, rtol=5e-2), "bf16 mismatch vs reference"

    print("KERNEL_OK")
</pallas_src>

<mosaic_0001>
module attributes {stable_mosaic.version = 11 : i64} {
  func.func @_mlp_kernel(%arg0: i32, %arg1: memref<64x128xf32, #tpu.memory_space<vmem>>, %arg2: memref<128x128xf32, #tpu.memory_space<vmem>>, %arg3: memref<1x128xf32, #tpu.memory_space<vmem>>, %arg4: memref<128x128xf32, #tpu.memory_space<vmem>>, %arg5: memref<1x128xf32, #tpu.memory_space<vmem>>, %arg6: memref<64x128xf32, #tpu.memory_space<vmem>>) attributes {dimension_semantics = [#tpu.dimension_semantics<parallel>], iteration_bounds = array<i64: 1>, scalar_prefetch = 0 : i64, scratch_operands = 0 : i64, tpu.core_type = #tpu.core_type<tc>, window_params = [{transform_indices = @transform_0, window_bounds = array<i64: 64, 128>}, {pipeline_mode = #tpu.pipeline_mode<synchronous>, transform_indices = @transform_1, window_bounds = array<i64: 128, 128>}, {pipeline_mode = #tpu.pipeline_mode<synchronous>, transform_indices = @transform_2, window_bounds = array<i64: 1, 128>}, {pipeline_mode = #tpu.pipeline_mode<synchronous>, transform_indices = @transform_3, window_bounds = array<i64: 128, 128>}, {pipeline_mode = #tpu.pipeline_mode<synchronous>, transform_indices = @transform_4, window_bounds = array<i64: 1, 128>}, {transform_indices = @transform_5, window_bounds = array<i64: 64, 128>}]} {
    %c0 = arith.constant 0 : index
    %c0_0 = arith.constant 0 : index
    %0 = vector.load %arg1[%c0, %c0_0] : memref<64x128xf32, #tpu.memory_space<vmem>>, vector<64x128xf32>
    %c0_1 = arith.constant 0 : index
    %c0_2 = arith.constant 0 : index
    %1 = vector.load %arg2[%c0_1, %c0_2] : memref<128x128xf32, #tpu.memory_space<vmem>>, vector<128x128xf32>
    %cst = arith.constant dense<0.000000e+00> : vector<64x128xf32>
    %2 = tpu.matmul %0, %1, %cst {dimension_numbers = #tpu.dot_dimension_numbers<[1], [0], [0], [1], [0, 0, 1, 1], [], []>} : vector<64x128xf32>, vector<128x128xf32>, vector<64x128xf32> -> vector<64x128xf32>
    %c0_3 = arith.constant 0 : index
    %c0_4 = arith.constant 0 : index
    %3 = vector.load %arg3[%c0_3, %c0_4] : memref<1x128xf32, #tpu.memory_space<vmem>>, vector<1x128xf32>
    %4 = vector.broadcast %3 : vector<1x128xf32> to vector<64x128xf32>
    %5 = arith.addf %2, %4 : vector<64x128xf32>
    %cst_5 = arith.constant 0.000000e+00 : f32
    %6 = vector.broadcast %cst_5 : f32 to vector<64x128xf32>
    %7 = arith.cmpf ogt, %5, %6 : vector<64x128xf32>
    %cst_6 = arith.constant 0.00999999977 : f32
    %8 = vector.broadcast %cst_6 : f32 to vector<64x128xf32>
    %9 = arith.mulf %8, %5 : vector<64x128xf32>
    %10 = arith.select %7, %5, %9 : vector<64x128xi1>, vector<64x128xf32>
    %c0_7 = arith.constant 0 : index
    %c0_8 = arith.constant 0 : index
    %11 = vector.load %arg4[%c0_7, %c0_8] : memref<128x128xf32, #tpu.memory_space<vmem>>, vector<128x128xf32>
    %cst_9 = arith.constant dense<0.000000e+00> : vector<64x128xf32>
    %12 = tpu.matmul %10, %11, %cst_9 {dimension_numbers = #tpu.dot_dimension_numbers<[1], [0], [0], [1], [0, 0, 1, 1], [], []>} : vector<64x128xf32>, vector<128x128xf32>, vector<64x128xf32> -> vector<64x128xf32>
    %c0_10 = arith.constant 0 : index
    %c0_11 = arith.constant 0 : index
    %13 = vector.load %arg5[%c0_10, %c0_11] : memref<1x128xf32, #tpu.memory_space<vmem>>, vector<1x128xf32>
    %14 = vector.broadcast %13 : vector<1x128xf32> to vector<64x128xf32>
    %15 = arith.addf %12, %14 : vector<64x128xf32>
    %c0_12 = arith.constant 0 : index
    %c0_13 = arith.constant 0 : index
    %16 = vector.load %arg6[%c0_12, %c0_13] : memref<64x128xf32, #tpu.memory_space<vmem>>, vector<64x128xf32>
    tpu.vector_store %arg6[%c0_12, %c0_13], %15 {strides = array<i32>} : memref<64x128xf32, #tpu.memory_space<vmem>>, vector<64x128xf32>,
    return
  }
  func.func @transform_0(%arg0: i32) -> (i32, i32) {
    %c0_i32 = arith.constant 0 : i32
    %c0_i32_0 = arith.constant 0 : i32
    return %arg0, %c0_i32 : i32, i32
  }
  func.func @transform_1(%arg0: i32) -> (i32, i32) {
    %c0_i32 = arith.constant 0 : i32
    %c0_i32_0 = arith.constant 0 : i32
    %c0_i32_1 = arith.constant 0 : i32
    return %c0_i32, %c0_i32_0 : i32, i32
  }
  func.func @transform_2(%arg0: i32) -> (i32, i32) {
    %c0_i32 = arith.constant 0 : i32
    %c0_i32_0 = arith.constant 0 : i32
    %c0_i32_1 = arith.constant 0 : i32
    return %c0_i32, %c0_i32_0 : i32, i32
  }
  func.func @transform_3(%arg0: i32) -> (i32, i32) {
    %c0_i32 = arith.constant 0 : i32
    %c0_i32_0 = arith.constant 0 : i32
    %c0_i32_1 = arith.constant 0 : i32
    return %c0_i32, %c0_i32_0 : i32, i32
  }
  func.func @transform_4(%arg0: i32) -> (i32, i32) {
    %c0_i32 = arith.constant 0 : i32
    %c0_i32_0 = arith.constant 0 : i32
    %c0_i32_1 = arith.constant 0 : i32
    return %c0_i32, %c0_i32_0 : i32, i32
  }
  func.func @transform_5(%arg0: i32) -> (i32, i32) {
    %c0_i32 = arith.constant 0 : i32
    %c0_i32_0 = arith.constant 0 : i32
    return %arg0, %c0_i32 : i32, i32
  }
}

</mosaic_0001>

<llo_original>
// kernel: tpu_custom_call.1
$region0: #{tpu_custom_call.1}
  #allocation0 [shape = 'u32[]', space=smem, size = 0x4, offset = 0x4, fixed_abs, tag = 'smem constant byte address 0x4 - core index']
  #allocation1 [shape = 'u32[144,128]{1,0:T(1,128)}', space=vmem, size = 0x12000, scoped, tag = 'internal scratch']
  %s0 = inlined_call_operand.hbm [shape: f32[64,128], index: 0, kind: input, shape index: {}]
  %s1 = inlined_call_operand.hbm [shape: f32[128,128], index: 1, kind: input, shape index: {}]
  %s2 = inlined_call_operand.vmem [shape: f32[1,128], index: 2, kind: input, shape index: {}]
  %s3 = inlined_call_operand.hbm [shape: f32[128,128], index: 3, kind: input, shape index: {}]
  %s4 = inlined_call_operand.vmem [shape: f32[1,128], index: 4, kind: input, shape index: {}]
  %s5 = inlined_call_operand.hbm [shape: f32[64,128], index: 5, kind: output, shape index: {}]
  %s6 = sld [smem:[#allocation0]]
  $region42: #{tpu_custom_call.1} parent=0
    _
  %s8 = ssub.s32 1, %s6
  %s9 = scalar_select 0, %s8, %s6
  $region1: #{tpu_custom_call.1} parent=0
    #allocation2 [shape = 'u8[32768]{0}', space=vmem, size = 0x8000, scoped, tag = 'input window, operand 0, single buffered']
    #allocation3 [shape = 's32[1]{0}', space=sflag, size = 0x4, scoped, tag = 'scoped memory for tpu_custom_call.1']
    #allocation4 [shape = 's32[1]{0}', space=sflag, size = 0x4, scoped, tag = 'scoped memory for tpu_custom_call.1']
    #allocation5 [shape = 'u8[65536]{0}', space=vmem, size = 0x10000, scoped, tag = 'input window, operand 1, single buffered']
    #allocation6 [shape = 's32[1]{0}', space=sflag, size = 0x4, scoped, tag = 'scoped memory for tpu_custom_call.1']
    #allocation7 [shape = 'u8[65536]{0}', space=vmem, size = 0x10000, scoped, tag = 'input window, operand 3, single buffered']
    #allocation8 [shape = 'u8[32768]{0}', space=vmem, size = 0x8000, scoped, tag = 'output window, operand 0, single buffered']
    %10 = vsyncpa [#allocation3], 0
    %11 = vsyncpa [#allocation6], 0
    %12 = vsyncpa [#allocation4], 0
    // Predicated region
    $region2: #{tpu_custom_call.1} parent=1 // pred_check
      _
    $region3: #{tpu_custom_call.1} parent=1 // pred_check_branch
      %14 = sbr.rel (0) target = $region5
    $region4: #{tpu_custom_call.1} parent=1 // pred_region
      %s16 = ssub.s32 1024, 1024
      %17 = vsyncadd [#allocation3], %s16
      %s18 = sshll.u32 [#allocation2], 4
      %s19 = int_to_ptr.vmem [resolvable:$true] %s18
      %24 = dma.hbm_to_vmem [thread:$0]  %s0, 1024, %s19, [#allocation3], 128, 128, 8
    $region5: #{tpu_custom_call.1} parent=1 // pred_fallthru
      _
    // Predicated region
    $region6: #{tpu_custom_call.1} parent=1 // pred_check
      _
    $region7: #{tpu_custom_call.1} parent=1 // pred_check_branch
      %26 = sbr.rel (0) target = $region9
    $region8: #{tpu_custom_call.1} parent=1 // pred_region
      %s28 = ssub.s32 2048, 2048
      %29 = vsyncadd [#allocation6], %s28
      %s30 = sshll.u32 [#allocation5], 4
      %s31 = int_to_ptr.vmem [resolvable:$true] %s30
      %36 = dma.hbm_to_vmem [thread:$0]  %s1, 2048, %s31, [#allocation6], 128, 128, 8
    $region9: #{tpu_custom_call.1} parent=1 // pred_fallthru
      _
    // Predicated region
    $region10: #{tpu_custom_call.1} parent=1 // pred_check
      _
    $region11: #{tpu_custom_call.1} parent=1 // pred_check_branch
      %38 = sbr.rel (0) target = $region13
    $region12: #{tpu_custom_call.1} parent=1 // pred_region
      _
    $region13: #{tpu_custom_call.1} parent=1 // pred_fallthru
      _
    // Predicated region
    $region14: #{tpu_custom_call.1} parent=1 // pred_check
      _
    $region15: #{tpu_custom_call.1} parent=1 // pred_check_branch
      %40 = sbr.rel (0) target = $region17
    $region16: #{tpu_custom_call.1} parent=1 // pred_region
      %s42 = ssub.s32 2048, 2048
      %43 = vsyncadd [#allocation6], %s42
      %s44 = sshll.u32 [#allocation7], 4
      %s45 = int_to_ptr.vmem [resolvable:$true] %s44
      %50 = dma.hbm_to_vmem [thread:$0]  %s3, 2048, %s45, [#allocation6], 128, 128, 8
    $region17: #{tpu_custom_call.1} parent=1 // pred_fallthru
      _
    // Predicated region
    $region18: #{tpu_custom_call.1} parent=1 // pred_check
      _
    $region19: #{tpu_custom_call.1} parent=1 // pred_check_branch
      %52 = sbr.rel (0) target = $region21
    $region20: #{tpu_custom_call.1} parent=1 // pred_region
      _
    $region21: #{tpu_custom_call.1} parent=1 // pred_fallthru
      _
    // Predicated region
    $region22: #{tpu_custom_call.1} parent=1 // pred_check
      _
    $region23: #{tpu_custom_call.1} parent=1 // pred_check_branch
      %54 = sbr.rel (0) target = $region25
    $region24: #{tpu_custom_call.1} parent=1 // pred_region
      %55 = dma.done [#allocation3], 1024
    $region25: #{tpu_custom_call.1} parent=1 // pred_fallthru
      _
    // Predicated region
    $region26: #{tpu_custom_call.1} parent=1 // pred_check
      _
    $region27: #{tpu_custom_call.1} parent=1 // pred_check_branch
      %57 = sbr.rel (0) target = $region29
    $region28: #{tpu_custom_call.1} parent=1 // pred_region
      %58 = dma.done [#allocation6], 2048
    $region29: #{tpu_custom_call.1} parent=1 // pred_fallthru
      _
    // Predicated region
    $region30: #{tpu_custom_call.1} parent=1 // pred_check
      _
    $region31: #{tpu_custom_call.1} parent=1 // pred_check_branch
      %60 = sbr.rel (0) target = $region33
    $region32: #{tpu_custom_call.1} parent=1 // pred_region
      %61 = dma.done [#allocation6], 2048
    $region33: #{tpu_custom_call.1} parent=1 // pred_fallthru
      _
    %v62 = vld [vmem:[#allocation2] sm:$0xff]
    %v63 = vld [vmem:[#allocation2 + $0x8] sm:$0xff]
    %v64 = vld [vmem:[#allocation2 + $0x10] sm:$0xff]
    %v65 = vld [vmem:[#allocation2 + $0x18] sm:$0xff]
    %v66 = vld [vmem:[#allocation2 + $0x20] sm:$0xff]
    %v67 = vld [vmem:[#allocation2 + $0x28] sm:$0xff]
    %v68 = vld [vmem:[#allocation2 + $0x30] sm:$0xff]
    %v69 = vld [vmem:[#allocation2 + $0x38] sm:$0xff]
    %v70 = vld [vmem:[#allocation5] sm:$0xff]
    %v71 = vld [vmem:[#allocation5 + $0x8] sm:$0xff]
    %v72 = vld [vmem:[#allocation5 + $0x10] sm:$0xff]
    %v73 = vld [vmem:[#allocation5 + $0x18] sm:$0xff]
    %v74 = vld [vmem:[#allocation5 + $0x20] sm:$0xff]
    %v75 = vld [vmem:[#allocation5 + $0x28] sm:$0xff]
    %v76 = vld [vmem:[#allocation5 + $0x30] sm:$0xff]
    %v77 = vld [vmem:[#allocation5 + $0x38] sm:$0xff]
    %v78 = vld [vmem:[#allocation5 + $0x40] sm:$0xff]
    %v79 = vld [vmem:[#allocation5 + $0x48] sm:$0xff]
    %v80 = vld [vmem:[#allocation5 + $0x50] sm:$0xff]
    %v81 = vld [vmem:[#allocation5 + $0x58] sm:$0xff]
    %v82 = vld [vmem:[#allocation5 + $0x60] sm:$0xff]
    %v83 = vld [vmem:[#allocation5 + $0x68] sm:$0xff]
    %v84 = vld [vmem:[#allocation5 + $0x70] sm:$0xff]
    %v85 = vld [vmem:[#allocation5 + $0x78] sm:$0xff]
    %v86 = vld [vmem:[%s2] sm:$0x1]
    %v88 = vlaneseq
    %v89 = vshrl.u32 %v88, 7
    %v90 = vsub.s32 0, %v89
    %v91 = vrot.slane %v86, %v90
    %93 = vmatprep.subr.mxu0 0.0
    %94 = vmatpush1.msra.mxu0 %v70
    %95 = vmatprep.subr.mxu0 0.0
    %96 = vmatpush1.msra.mxu0 %v71
    %97 = vmatprep.subr.mxu0 0.0
    %98 = vmatpush1.msra.mxu0 %v72
    %99 = vmatprep.subr.mxu0 0.0
    %100 = vmatpush1.msra.mxu0 %v73
    %101 = vmatprep.subr.mxu0 0.0
    %102 = vmatpush1.msra.mxu0 %v74
    %103 = vmatprep.subr.mxu0 0.0
    %104 = vmatpush1.msra.mxu0 %v75
    %105 = vmatprep.subr.mxu0 0.0
    %106 = vmatpush1.msra.mxu0 %v76
    %107 = vmatprep.subr.mxu0 0.0
    %108 = vmatpush1.msra.mxu0 %v77
    %109 = vmatprep.subr.mxu0 0.0
    %110 = vmatpush1.msra.mxu0 %v78
    %111 = vmatprep.subr.mxu0 0.0
    %112 = vmatpush1.msra.mxu0 %v79
    %113 = vmatprep.subr.mxu0 0.0
    %114 = vmatpush1.msra.mxu0 %v80
    %115 = vmatprep.subr.mxu0 0.0
    %116 = vmatpush1.msra.mxu0 %v81
    %117 = vmatprep.subr.mxu0 0.0
    %118 = vmatpush1.msra.mxu0 %v82
    %119 = vmatprep.subr.mxu0 0.0
    %120 = vmatpush1.msra.mxu0 %v83
    %121 = vmatprep.subr.mxu0 0.0
    %122 = vmatpush1.msra.mxu0 %v84
    %123 = vmatprep.subr.mxu0 0.0
    %124 = vmatpush1.msra.mxu0 %v85
    %125 = vmatprep.subr.mxu0 0.0
    %126 = vmatpush1.msra.mxu0 0.0
    %127 = vmatprep.subr.mxu0 0.0
    %128 = vmatpush1.msra.mxu0 0.0
    %129 = vmatprep.subr.mxu0 0.0
    %130 = vmatpush1.msra.mxu0 0.0
    %131 = vmatprep.subr.mxu0 0.0
    %132 = vmatpush1.msra.mxu0 0.0
    %133 = vmatprep.subr.mxu0 0.0
    %134 = vmatpush1.msra.mxu0 0.0
    %135 = vmatprep.subr.mxu0 0.0
    %136 = vmatpush1.msra.mxu0 0.0
    %137 = vmatprep.subr.mxu0 0.0
    %138 = vmatpush1.msra.mxu0 0.0
    %139 = vmatprep.subr.mxu0 0.0
    %140 = vmatpush1.msra.mxu0 0.0
    %141 = vmatprep.subr.mxu0 0.0
    %142 = vmatpush1.msra.mxu0 0.0
    %143 = vmatprep.subr.mxu0 0.0
    %144 = vmatpush1.msra.mxu0 0.0
    %145 = vmatprep.subr.mxu0 0.0
    %146 = vmatpush1.msra.mxu0 0.0
    %147 = vmatprep.subr.mxu0 0.0
    %148 = vmatpush1.msra.mxu0 0.0
    %149 = vmatprep.subr.mxu0 0.0
    %150 = vmatpush1.msra.mxu0 0.0
    %151 = vmatprep.subr.mxu0 0.0
    %152 = vmatpush1.msra.mxu0 0.0
    %153 = vmatprep.subr.mxu0 0.0
    %154 = vmatpush1.msra.mxu0 0.0
    %155 = vmatprep.subr.mxu0 0.0
    %156 = vmatpush1.msra.mxu0 0.0
    %157 = vmatprep.mubr.f32.mxu0 0.0
    %158 = vmatmul.mubr.f32.gmra.mrb[0].mxu0 %v62
    %v159 = vpop.f32.mrb[0].mxu0
    %v160 = vadd.f32 %v91, %v159
    %v161 = vpop.f32.mrb[0].mxu0
    %162 = vmatprep.mubr.f32.mxu0 0.0
    %163 = vmatmul.mubr.f32.gmra.mrb[0].mxu0 %v63
    %v164 = vpop.f32.mrb[0].mxu0
    %v165 = vadd.f32 %v91, %v164
    %v166 = vpop.f32.mrb[0].mxu0
    %167 = vmatprep.mubr.f32.mxu0 0.0
    %168 = vmatmul.mubr.f32.gmra.mrb[0].mxu0 %v64
    %v169 = vpop.f32.mrb[0].mxu0
    %v170 = vadd.f32 %v91, %v169
    %v171 = vpop.f32.mrb[0].mxu0
    %172 = vmatprep.mubr.f32.mxu0 0.0
    %173 = vmatmul.mubr.f32.gmra.mrb[0].mxu0 %v65
    %v174 = vpop.f32.mrb[0].mxu0
    %v175 = vadd.f32 %v91, %v174
    %v176 = vpop.f32.mrb[0].mxu0
    %177 = vmatprep.mubr.f32.mxu0 0.0
    %178 = vmatmul.mubr.f32.gmra.mrb[0].mxu0 %v66
    %v179 = vpop.f32.mrb[0].mxu0
    %v180 = vadd.f32 %v91, %v179
    %v181 = vpop.f32.mrb[0].mxu0
    %182 = vmatprep.mubr.f32.mxu0 0.0
    %183 = vmatmul.mubr.f32.gmra.mrb[0].mxu0 %v67
    %v184 = vpop.f32.mrb[0].mxu0
    %v185 = vadd.f32 %v91, %v184
    %v186 = vpop.f32.mrb[0].mxu0
    %187 = vmatprep.mubr.f32.mxu0 0.0
    %188 = vmatmul.mubr.f32.gmra.mrb[0].mxu0 %v68
    %v189 = vpop.f32.mrb[0].mxu0
    %v190 = vadd.f32 %v91, %v189
    %v191 = vpop.f32.mrb[0].mxu0
    %192 = vmatprep.mubr.f32.mxu0 0.0
    %193 = vmatmul.mubr.f32.gmra.mrb[0].mxu0 %v69
    %v194 = vpop.f32.mrb[0].mxu0
    %v195 = vadd.f32 %v91, %v194
    %v196 = vpop.f32.mrb[0].mxu0
    %197 = vdwg.mxu0
    %vm198 = vcmp.gt.f32.partialorder %v160, 0.0
    %vm199 = vcmp.gt.f32.partialorder %v165, 0.0
    %vm200 = vcmp.gt.f32.partialorder %v170, 0.0
    %vm201 = vcmp.gt.f32.partialorder %v175, 0.0
    %vm202 = vcmp.gt.f32.partialorder %v180, 0.0
    %vm203 = vcmp.gt.f32.partialorder %v185, 0.0
    %vm204 = vcmp.gt.f32.partialorder %v190, 0.0
    %vm205 = vcmp.gt.f32.partialorder %v195, 0.0
    %v206 = vmul.f32 %v160, 0.01
    %v207 = vmul.f32 %v165, 0.01
    %v208 = vmul.f32 %v170, 0.01
    %v209 = vmul.f32 %v175, 0.01
    %v210 = vmul.f32 %v180, 0.01
    %v211 = vmul.f32 %v185, 0.01
    %v212 = vmul.f32 %v190, 0.01
    %v213 = vmul.f32 %v195, 0.01
    %v214 = vsel %vm198, %v160, %v206
    %v215 = vsel %vm199, %v165, %v207
    %v216 = vsel %vm200, %v170, %v208
    %v217 = vsel %vm201, %v175, %v209
    %v218 = vsel %vm202, %v180, %v210
    %v219 = vsel %vm203, %v185, %v211
    %v220 = vsel %vm204, %v190, %v212
    %v221 = vsel %vm205, %v195, %v213
    %v222 = vld [vmem:[#allocation7] sm:$0xff]
    %v223 = vld [vmem:[#allocation7 + $0x8] sm:$0xff]
    %v224 = vld [vmem:[#allocation7 + $0x10] sm:$0xff]
    %v225 = vld [vmem:[#allocation7 + $0x18] sm:$0xff]
    %v226 = vld [vmem:[#allocation7 + $0x20] sm:$0xff]
    %v227 = vld [vmem:[#allocation7 + $0x28] sm:$0xff]
    %v228 = vld [vmem:[#allocation7 + $0x30] sm:$0xff]
    %v229 = vld [vmem:[#allocation7 + $0x38] sm:$0xff]
    %v230 = vld [vmem:[#allocation7 + $0x40] sm:$0xff]
    %v231 = vld [vmem:[#allocation7 + $0x48] sm:$0xff]
    %v232 = vld [vmem:[#allocation7 + $0x50] sm:$0xff]
    %v233 = vld [vmem:[#allocation7 + $0x58] sm:$0xff]
    %v234 = vld [vmem:[#allocation7 + $0x60] sm:$0xff]
    %v235 = vld [vmem:[#allocation7 + $0x68] sm:$0xff]
    %v236 = vld [vmem:[#allocation7 + $0x70] sm:$0xff]
    %v237 = vld [vmem:[#allocation7 + $0x78] sm:$0xff]
    %v238 = vld [vmem:[%s4] sm:$0x1]
    %v240 = vlaneseq
    %v241 = vshrl.u32 %v240, 7
    %v242 = vsub.s32 0, %v241
    %v243 = vrot.slane %v238, %v242
    %245 = vmatprep.subr.mxu0 0.0
    %246 = vmatpush1.msra.mxu0 %v222
    %247 = vmatprep.subr.mxu0 0.0
    %248 = vmatpush1.msra.mxu0 %v223
    %249 = vmatprep.subr.mxu0 0.0
    %250 = vmatpush1.msra.mxu0 %v224
    %251 = vmatprep.subr.mxu0 0.0
    %252 = vmatpush1.msra.mxu0 %v225
    %253 = vmatprep.subr.mxu0 0.0
    %254 = vmatpush1.msra.mxu0 %v226
    %255 = vmatprep.subr.mxu0 0.0
    %256 = vmatpush1.msra.mxu0 %v227
    %257 = vmatprep.subr.mxu0 0.0
    %258 = vmatpush1.msra.mxu0 %v228
    %259 = vmatprep.subr.mxu0 0.0
    %260 = vmatpush1.msra.mxu0 %v229
    %261 = vmatprep.subr.mxu0 0.0
    %262 = vmatpush1.msra.mxu0 %v230
    %263 = vmatprep.subr.mxu0 0.0
    %264 = vmatpush1.msra.mxu0 %v231
    %265 = vmatprep.subr.mxu0 0.0
    %266 = vmatpush1.msra.mxu0 %v232
    %267 = vmatprep.subr.mxu0 0.0
    %268 = vmatpush1.msra.mxu0 %v233
    %269 = vmatprep.subr.mxu0 0.0
    %270 = vmatpush1.msra.mxu0 %v234
    %271 = vmatprep.subr.mxu0 0.0
    %272 = vmatpush1.msra.mxu0 %v235
    %273 = vmatprep.subr.mxu0 0.0
    %274 = vmatpush1.msra.mxu0 %v236
    %275 = vmatprep.subr.mxu0 0.0
    %276 = vmatpush1.msra.mxu0 %v237
    %277 = vmatprep.subr.mxu0 0.0
    %278 = vmatpush1.msra.mxu0 0.0
    %279 = vmatprep.subr.mxu0 0.0
    %280 = vmatpush1.msra.mxu0 0.0
    %281 = vmatprep.subr.mxu0 0.0
    %282 = vmatpush1.msra.mxu0 0.0
    %283 = vmatprep.subr.mxu0 0.0
    %284 = vmatpush1.msra.mxu0 0.0
    %285 = vmatprep.subr.mxu0 0.0
    %286 = vmatpush1.msra.mxu0 0.0
    %287 = vmatprep.subr.mxu0 0.0
    %288 = vmatpush1.msra.mxu0 0.0
    %289 = vmatprep.subr.mxu0 0.0
    %290 = vmatpush1.msra.mxu0 0.0
    %291 = vmatprep.subr.mxu0 0.0
    %292 = vmatpush1.msra.mxu0 0.0
    %293 = vmatprep.subr.mxu0 0.0
    %294 = vmatpush1.msra.mxu0 0.0
    %295 = vmatprep.subr.mxu0 0.0
    %296 = vmatpush1.msra.mxu0 0.0
    %297 = vmatprep.subr.mxu0 0.0
    %298 = vmatpush1.msra.mxu0 0.0
    %299 = vmatprep.subr.mxu0 0.0
    %300 = vmatpush1.msra.mxu0 0.0
    %301 = vmatprep.subr.mxu0 0.0
    %302 = vmatpush1.msra.mxu0 0.0
    %303 = vmatprep.subr.mxu0 0.0
    %304 = vmatpush1.msra.mxu0 0.0
    %305 = vmatprep.subr.mxu0 0.0
    %306 = vmatpush1.msra.mxu0 0.0
    %307 = vmatprep.subr.mxu0 0.0
    %308 = vmatpush1.msra.mxu0 0.0
    %309 = vmatprep.mubr.f32.mxu0 0.0
    %310 = vmatmul.mubr.f32.gmra.mrb[0].mxu0 %v214
    %v311 = vpop.f32.mrb[0].mxu0
    %v312 = vadd.f32 %v243, %v311
    %v313 = vpop.f32.mrb[0].mxu0
    %314 = vmatprep.mubr.f32.mxu0 0.0
    %315 = vmatmul.mubr.f32.gmra.mrb[0].mxu0 %v215
    %v316 = vpop.f32.mrb[0].mxu0
    %v317 = vadd.f32 %v243, %v316
    %v318 = vpop.f32.mrb[0].mxu0
    %319 = vmatprep.mubr.f32.mxu0 0.0
    %320 = vmatmul.mubr.f32.gmra.mrb[0].mxu0 %v216
    %v321 = vpop.f32.mrb[0].mxu0
    %v322 = vadd.f32 %v243, %v321
    %v323 = vpop.f32.mrb[0].mxu0
    %324 = vmatprep.mubr.f32.mxu0 0.0
    %325 = vmatmul.mubr.f32.gmra.mrb[0].mxu0 %v217
    %v326 = vpop.f32.mrb[0].mxu0
    %v327 = vadd.f32 %v243, %v326
    %v328 = vpop.f32.mrb[0].mxu0
    %329 = vmatprep.mubr.f32.mxu0 0.0
    %330 = vmatmul.mubr.f32.gmra.mrb[0].mxu0 %v218
    %v331 = vpop.f32.mrb[0].mxu0
    %v332 = vadd.f32 %v243, %v331
    %v333 = vpop.f32.mrb[0].mxu0
    %334 = vmatprep.mubr.f32.mxu0 0.0
    %335 = vmatmul.mubr.f32.gmra.mrb[0].mxu0 %v219
    %v336 = vpop.f32.mrb[0].mxu0
    %v337 = vadd.f32 %v243, %v336
    %v338 = vpop.f32.mrb[0].mxu0
    %339 = vmatprep.mubr.f32.mxu0 0.0
    %340 = vmatmul.mubr.f32.gmra.mrb[0].mxu0 %v220
    %v341 = vpop.f32.mrb[0].mxu0
    %v342 = vadd.f32 %v243, %v341
    %v343 = vpop.f32.mrb[0].mxu0
    %344 = vmatprep.mubr.f32.mxu0 0.0
    %345 = vmatmul.mubr.f32.gmra.mrb[0].mxu0 %v221
    %v346 = vpop.f32.mrb[0].mxu0
    %v347 = vadd.f32 %v243, %v346
    %v348 = vpop.f32.mrb[0].mxu0
    %349 = vdwg.mxu0
    %350 = vst [vmem:[#allocation8] sm:$0xff] %v312
    %351 = vst [vmem:[#allocation8 + $0x8] sm:$0xff] %v317
    %352 = vst [vmem:[#allocation8 + $0x10] sm:$0xff] %v322
    %353 = vst [vmem:[#allocation8 + $0x18] sm:$0xff] %v327
    %354 = vst [vmem:[#allocation8 + $0x20] sm:$0xff] %v332
    %355 = vst [vmem:[#allocation8 + $0x28] sm:$0xff] %v337
    %356 = vst [vmem:[#allocation8 + $0x30] sm:$0xff] %v342
    %357 = vst [vmem:[#allocation8 + $0x38] sm:$0xff] %v347
    // Predicated region
    $region34: #{tpu_custom_call.1} parent=1 // pred_check
      _
    $region35: #{tpu_custom_call.1} parent=1 // pred_check_branch
      %359 = sbr.rel (0) target = $region37
    $region36: #{tpu_custom_call.1} parent=1 // pred_region
      %s361 = ssub.s32 1024, 1024
      %362 = vsyncadd [#allocation4], %s361
      %s363 = sshll.u32 [#allocation8], 4
      %s364 = int_to_ptr.vmem [resolvable:$true] %s363
      %369 = dma.vmem_to_hbm [thread:$0]  %s364, 1024, %s5, [#allocation4], 128, 128, 8
    $region37: #{tpu_custom_call.1} parent=1 // pred_fallthru
      _
    // Predicated region
    $region38: #{tpu_custom_call.1} parent=1 // pred_check
      _
    $region39: #{tpu_custom_call.1} parent=1 // pred_check_branch
      %371 = sbr.rel (0) target = $region41
    $region40: #{tpu_custom_call.1} parent=1 // pred_region
      %372 = dma.done [#allocation4], 1024
    $region41: #{tpu_custom_call.1} parent=1 // pred_fallthru
      _
    %373 = vsyncpa [#allocation3], 1
    %374 = vsyncpa [#allocation6], 1
    %375 = vsyncpa [#allocation4], 1

</llo_original>
